<compile_context>
chip_gen: v7x
topology: tpu7x:2x2x1
jax: 0.10.0
libtpu: 0.0.40
codegen_flags: <defaults>
</compile_context>

<pallas_src>
import jax
import jax.numpy as jnp
from jax.experimental import pallas as pl
from jax.experimental.pallas import tpu as pltpu


# ---------------------------------------------------------------------------
# small helpers
# ---------------------------------------------------------------------------
def _round_up(x, m):
    return (x + m - 1) // m * m


def _pick_tile(n, pref, quantum):
    """Largest multiple of `quantum` that divides n and is <= max(pref, quantum).
    Caller guarantees n % quantum == 0 (inputs are padded)."""
    t = max(quantum, min(pref, n))
    t -= t % quantum
    while n % t != 0:
        t -= quantum
    return t


def _vmem_budget_bytes():
    """Per-generation VMEM budget (~3/4 of physical: v5e/v6e 128 MiB -> 96 MiB,
    v7x 64 MiB -> 48 MiB).  Conservative default if the query is unavailable."""
    try:
        info = pltpu.get_tpu_info()
        cap = getattr(info, "vmem_capacity_bytes", None)
        if cap:
            return int(cap) * 3 // 4
    except Exception:
        pass
    return 48 << 20


def _fold_bn(gamma, beta, mean, var, eps=1e-5):
    scale = gamma / jnp.sqrt(var + eps)
    shift = beta - mean * scale
    return scale, shift


def _prepare_gate_params(params):
    """Collapse the 4 branches: W1 = concatenated first-layer weights (4C,4C),
    W2 = block-diagonal second layer (4C,4C), plus concatenated folded-BN
    scale/shift vectors."""
    C = params["w12"].shape[0]
    w1_rows, w2_blocks = [], []
    s1l, b1l, s2l, b2l = [], [], [], []
    for i in (1, 2, 3, 4):
        w1_rows.append(params[f"w{i}1"].astype(jnp.float32))
        w2_blocks.append(params[f"w{i}2"].astype(jnp.float32))
        s, b = _fold_bn(*params[f"bn{i}1"])
        s1l.append(s); b1l.append(b)
        s, b = _fold_bn(*params[f"bn{i}2"])
        s2l.append(s); b2l.append(b)
    W1 = jnp.concatenate(w1_rows, axis=0)                       # (4C, 4C)
    W2 = jnp.zeros((4 * C, 4 * C), jnp.float32)
    for i, blk in enumerate(w2_blocks):
        W2 = W2.at[i * C:(i + 1) * C, i * C:(i + 1) * C].set(blk)
    s1 = jnp.concatenate(s1l); b1 = jnp.concatenate(b1l)
    s2 = jnp.concatenate(s2l); b2 = jnp.concatenate(b2l)
    return W1, W2, s1, b1, s2, b2


# ---------------------------------------------------------------------------
# Fused single-pass kernel: pool -> gates -> gated sum, one batch per step.
# ---------------------------------------------------------------------------
def _cab_fused_kernel(w1t_ref, b1_ref, w2_ref, b2_ref,
                      x1_ref, x2_ref, x3_ref, x4_ref, o_ref):
    # w1t_ref: (4, C, 4C)  w1t_ref[i] = (scale1 * W1_all)[:, i*C:(i+1)*C].T
    # b1_ref : (1, 4C)     concatenated folded-BN shift of the first layer
    # w2_ref : (4, C, C)   w2_ref[i] = scale2_i[:, None] * w_i2
    # b2_ref : (4, C, 1)   per-branch folded-BN shift of the second layer
    # x*_ref : (C, HW)     one batch slab per branch, o_ref same shape.
    C = x1_ref.shape[0]
    hw = x1_ref.shape[1]
    inv_hw = jnp.float32(1.0 / hw)

    x1 = x1_ref[...].astype(jnp.float32)
    x2 = x2_ref[...].astype(jnp.float32)
    x3 = x3_ref[...].astype(jnp.float32)
    x4 = x4_ref[...].astype(jnp.float32)

    # Global average pool of each branch, reusing the VMEM-resident tiles
    # (single HBM read per element for the entire op).
    p1 = jnp.sum(x1, axis=1, keepdims=True) * inv_hw            # (C, 1)
    p2 = jnp.sum(x2, axis=1, keepdims=True) * inv_hw
    p3 = jnp.sum(x3, axis=1, keepdims=True) * inv_hw
    p4 = jnp.sum(x4, axis=1, keepdims=True) * inv_hw

    # First 1x1 conv of all 4 branches at once (BN scale folded into weights),
    # computed as broadcast-multiply + sublane reduce (tiny, no MXU needed):
    #   y[0, j] = relu( sum_k W1T_s[k, j] * pooled[k] + b1[j] )
    y = (jnp.sum(w1t_ref[0] * p1, axis=0, keepdims=True)
         + jnp.sum(w1t_ref[1] * p2, axis=0, keepdims=True)
         + jnp.sum(w1t_ref[2] * p3, axis=0, keepdims=True)
         + jnp.sum(w1t_ref[3] * p4, axis=0, keepdims=True)
         + b1_ref[...])                                         # (1, 4C)
    y = jnp.maximum(y, 0.0)

    # Second (block-diagonal) 1x1 conv + folded BN + sigmoid -> per-channel gates.
    def gate(i):
        yi = y[:, i * C:(i + 1) * C]                            # (1, C)
        zi = jnp.sum(w2_ref[i] * yi, axis=1, keepdims=True) + b2_ref[i]   # (C, 1)
        return jax.nn.sigmoid(zi)

    g1, g2, g3, g4 = gate(0), gate(1), gate(2), gate(3)
    o_ref[...] = (g1 * x1 + g2 * x2 + g3 * x3 + g4 * x4).astype(o_ref.dtype)


def _cab_fused(xs3, gate_mats, B, C, HW, dtype, budget):
    W1, W2, s1, b1, s2, b2 = gate_mats
    NC = 4 * C

    # Fold the first-layer BN scale into the weights; stack per input branch.
    W1s = s1[:, None] * W1                                       # (4C, 4C)
    w1t_stack = jnp.stack(
        [W1s[:, i * C:(i + 1) * C].T for i in range(4)], axis=0)  # (4, C, 4C)
    b1_row = b1[None, :]                                          # (1, 4C)
    w2_stack = jnp.stack(
        [s2[i * C:(i + 1) * C, None] * W2[i * C:(i + 1) * C, i * C:(i + 1) * C]
         for i in range(4)], axis=0)                              # (4, C, C)
    b2_stack = jnp.stack(
        [b2[i * C:(i + 1) * C, None] for i in range(4)], axis=0)  # (4, C, 1)

    itemsize = jnp.dtype(dtype).itemsize
    Cpad = _round_up(C, 8)
    HWpad = _round_up(HW, 128)
    vmem_limit = int(min(budget,
                         max(16 << 20, 12 * Cpad * HWpad * itemsize + (2 << 20))))

    x_spec = pl.BlockSpec((None, C, HW), lambda b: (b, 0, 0))

    return pl.pallas_call(
        _cab_fused_kernel,
        out_shape=jax.ShapeDtypeStruct((B, C, HW), dtype),
        grid_spec=pltpu.PrefetchScalarGridSpec(
            num_scalar_prefetch=0,
            grid=(B,),
            in_specs=[
                pl.BlockSpec((4, C, NC), lambda b: (0, 0, 0)),
                pl.BlockSpec((1, NC), lambda b: (0, 0)),
                pl.BlockSpec((4, C, C), lambda b: (0, 0, 0)),
                pl.BlockSpec((4, C, 1), lambda b: (0, 0, 0)),
                x_spec, x_spec, x_spec, x_spec,
            ],
            out_specs=pl.BlockSpec((None, C, HW), lambda b: (b, 0, 0)),
        ),
        compiler_params=pltpu.CompilerParams(
            # batch axis is fully parallel -> both TensorCores used on v7x (B>=2)
            dimension_semantics=("parallel",),
            vmem_limit_bytes=vmem_limit),
    )(w1t_stack, b1_row, w2_stack, b2_stack, *xs3)


# ---------------------------------------------------------------------------
# Fallback path (batch slab too big for VMEM): fused row-sum pooling kernel
# + XLA gate math (one fused matmul pair) + gated-sum kernel.
# ---------------------------------------------------------------------------
def _rowsum_kernel(x1_ref, x2_ref, x3_ref, x4_ref,
                   s1_ref, s2_ref, s3_ref, s4_ref):
    j = pl.program_id(1)

    def accumulate(x_ref, s_ref):
        part = jnp.sum(x_ref[...].astype(jnp.float32), axis=1, keepdims=True)

        @pl.when(j == 0)
        def _():
            s_ref[...] = part

        @pl.when(j > 0)
        def _():
            s_ref[...] = s_ref[...] + part

    accumulate(x1_ref, s1_ref)
    accumulate(x2_ref, s2_ref)
    accumulate(x3_ref, s3_ref)
    accumulate(x4_ref, s4_ref)


def _gated_sum_kernel(g1_ref, g2_ref, g3_ref, g4_ref,
                      x1_ref, x2_ref, x3_ref, x4_ref, o_ref):
    acc = (g1_ref[...] * x1_ref[...].astype(jnp.float32)
           + g2_ref[...] * x2_ref[...].astype(jnp.float32)
           + g3_ref[...] * x3_ref[...].astype(jnp.float32)
           + g4_ref[...] * x4_ref[...].astype(jnp.float32))
    o_ref[...] = acc.astype(o_ref.dtype)


def _cab_fallback(xs, gate_mats, B, C, H, W, dtype, budget):
    W1, W2, s1, b1, s2, b2 = gate_mats
    HW = H * W
    R = B * C
    itemsize = jnp.dtype(dtype).itemsize
    Rp = _round_up(R, 8)
    HWp = _round_up(HW, 128)

    xs2 = [x.reshape(R, HW) for x in xs]
    if Rp != R or HWp != HW:
        # Pad to (8, 128)-aligned shapes: bounded tile sizes for any H*W and
        # lane-dense (unmasked) stores.
        xs2 = [jnp.pad(x, ((0, Rp - R), (0, HWp - HW))) for x in xs2]

    # Tile selection: target ~2-4 MiB per stream per grid step, bounded by the
    # per-generation VMEM budget; ensure >= 2 grid steps for v7x megacore.
    T = _pick_tile(HWp, 4096, 128)
    per_tile_target = max(1 << 20, min(4 << 20, budget // 12))
    sr_pref = max(8, (per_tile_target // (T * itemsize)) // 8 * 8)
    SR = _pick_tile(Rp, sr_pref, 8)
    if Rp // SR == 1 and HWp // T == 1:
        if Rp >= 16:
            SR = _pick_tile(Rp, max(8, SR // 2), 8)
        elif HWp >= 256:
            T = _pick_tile(HWp, max(128, T // 2), 128)
    grid = (Rp // SR, HWp // T)
    vmem_limit = int(min(budget, max(16 << 20, 12 * SR * T * itemsize + (2 << 20))))

    x_spec = pl.BlockSpec((SR, T), lambda i, j: (i, j))
    col_spec = pl.BlockSpec((SR, 1), lambda i, j: (i, 0))

    # Pass 1: per-row sums of all four inputs in a single fused read.
    sums = pl.pallas_call(
        _rowsum_kernel,
        out_shape=tuple(jax.ShapeDtypeStruct((Rp, 1), jnp.float32) for _ in range(4)),
        grid_spec=pltpu.PrefetchScalarGridSpec(
            num_scalar_prefetch=0,
            grid=grid,
            in_specs=[x_spec] * 4,
            out_specs=tuple([col_spec] * 4),
        ),
        compiler_params=pltpu.CompilerParams(
            dimension_semantics=("parallel", "arbitrary"),
            vmem_limit_bytes=vmem_limit),
    )(*xs2)

    # Gate path: one fused matmul pair for all 4 branches (tiny, plain XLA).
    pooled = jnp.concatenate(
        [s[:R, 0].reshape(B, C) for s in sums], axis=1) * jnp.float32(1.0 / HW)
    y = jnp.maximum(
        jnp.dot(pooled, W1.T, preferred_element_type=jnp.float32) * s1 + b1, 0.0)
    z = jnp.dot(y, W2.T, preferred_element_type=jnp.float32) * s2 + b2
    gates = jax.nn.sigmoid(z)                                    # (B, 4C)

    gcols = []
    for i in range(4):
        gi = gates[:, i * C:(i + 1) * C].reshape(R, 1).astype(jnp.float32)
        if Rp != R:
            gi = jnp.pad(gi, ((0, Rp - R), (0, 0)))
        gcols.append(gi)

    # Pass 2: gated elementwise sum (second and last HBM read of each x).
    out = pl.pallas_call(
        _gated_sum_kernel,
        out_shape=jax.ShapeDtypeStruct((Rp, HWp), dtype),
        grid_spec=pltpu.PrefetchScalarGridSpec(
            num_scalar_prefetch=0,
            grid=grid,
            in_specs=[col_spec] * 4 + [x_spec] * 4,
            out_specs=pl.BlockSpec((SR, T), lambda i, j: (i, j)),
        ),
        compiler_params=pltpu.CompilerParams(
            dimension_semantics=("parallel", "parallel"),
            vmem_limit_bytes=vmem_limit),
    )(*gcols, *xs2)

    return out[:R, :HW].reshape(B, C, H, W)


# ---------------------------------------------------------------------------
# Public wrapper
# ---------------------------------------------------------------------------
def cab_improve2_pallas(x1, x2, x3, x4, params, force_fallback=False):
    B, C, H, W = x1.shape
    HW = H * W
    dtype = x1.dtype
    gate_mats = _prepare_gate_params(params)
    budget = _vmem_budget_bytes()

    itemsize = jnp.dtype(dtype).itemsize
    Cpad = _round_up(C, 8)
    HWpad = _round_up(HW, 128)
    # 5 streams (4 in + 1 out), double-buffered, + params + headroom.
    fused_bytes = 12 * Cpad * HWpad * itemsize + (2 << 20)

    if not force_fallback and fused_bytes <= budget:
        xs3 = [x.reshape(B, C, HW) for x in (x1, x2, x3, x4)]
        out = _cab_fused(xs3, gate_mats, B, C, HW, dtype, budget)
        return out.reshape(B, C, H, W)

    return _cab_fallback([x1, x2, x3, x4], gate_mats, B, C, H, W, dtype, budget)


# ---------------------------------------------------------------------------
# Pure-JAX reference (NCHW, same semantics as the PyTorch forward, eval BN).
# ---------------------------------------------------------------------------
def cab_improve2_reference(x1, x2, x3, x4, params):
    x = jnp.concatenate([x1, x2, x3, x4], axis=1)                # (B, 4C, H, W)
    pooled = jnp.mean(x.astype(jnp.float32), axis=(2, 3))        # (B, 4C)

    def branch(w1, bn1, w2, bn2):
        y = pooled @ w1.T
        s, b = _fold_bn(*bn1)
        y = jnp.maximum(y * s + b, 0.0)
        y = y @ w2.T
        s, b = _fold_bn(*bn2)
        return jax.nn.sigmoid(y * s + b)                         # (B, C)

    gates = [branch(params[f"w{i}1"], params[f"bn{i}1"],
                    params[f"w{i}2"], params[f"bn{i}2"]) for i in (1, 2, 3, 4)]
    xs = [x1, x2, x3, x4]
    out = sum(g[:, :, None, None] * xi for g, xi in zip(gates, xs))
    return out.astype(x1.dtype)


def make_params(key, in_channels, out_channels):
    keys = jax.random.split(key, 40)
    ki = iter(keys)
    p = {}
    for i in (1, 2, 3, 4):
        p[f"w{i}1"] = 0.3 * jax.random.normal(next(ki), (out_channels, in_channels),
                                              jnp.float32)
        p[f"w{i}2"] = 0.3 * jax.random.normal(next(ki), (out_channels, out_channels),
                                              jnp.float32)
        for j in (1, 2):
            gamma = 0.5 + jax.random.uniform(next(ki), (out_channels,), jnp.float32)
            beta = 0.2 * jax.random.normal(next(ki), (out_channels,), jnp.float32)
            mean = 0.1 * jax.random.normal(next(ki), (out_channels,), jnp.float32)
            var = 0.5 + jax.random.uniform(next(ki), (out_channels,), jnp.float32)
            p[f"bn{i}{j}"] = (gamma, beta, mean, var)
    return p


if __name__ == "__main__":
    B, C, H, W = 2, 4, 16, 16          # each x_i: (2, 4, 16, 16); in_channels = 16
    key = jax.random.PRNGKey(0)
    k1, k2, k3, k4, kp = jax.random.split(key, 5)
    x1 = jax.random.normal(k1, (B, C, H, W), jnp.float32)
    x2 = jax.random.normal(k2, (B, C, H, W), jnp.float32)
    x3 = jax.random.normal(k3, (B, C, H, W), jnp.float32)
    x4 = jax.random.normal(k4, (B, C, H, W), jnp.float32)
    params = make_params(kp, in_channels=4 * C, out_channels=C)

    ref = cab_improve2_reference(x1, x2, x3, x4, params)

    # Primary fused single-pass path (used for these shapes).
    out = jax.block_until_ready(cab_improve2_pallas(x1, x2, x3, x4, params))
    assert out.shape == (B, C, H, W)
    assert jnp.allclose(out, ref, atol=1e-5, rtol=1e-5), float(
        jnp.max(jnp.abs(out - ref)))

    # Two-pass fallback path (exercised explicitly so it stays tested).
    out_fb = jax.block_until_ready(
        cab_improve2_pallas(x1, x2, x3, x4, params, force_fallback=True))
    assert jnp.allclose(out_fb, ref, atol=1e-5, rtol=1e-5), float(
        jnp.max(jnp.abs(out_fb - ref)))

    print("KERNEL_OK")
</pallas_src>

<mosaic_0001>
module attributes {stable_mosaic.version = 11 : i64} {
  func.func @_cab_fused_kernel(%arg0: i32, %arg1: memref<4x4x16xf32, #tpu.memory_space<vmem>>, %arg2: memref<1x16xf32, #tpu.memory_space<vmem>>, %arg3: memref<4x4x4xf32, #tpu.memory_space<vmem>>, %arg4: memref<4x4x1xf32, #tpu.memory_space<vmem>>, %arg5: memref<1x4x256xf32, #tpu.memory_space<vmem>>, %arg6: memref<1x4x256xf32, #tpu.memory_space<vmem>>, %arg7: memref<1x4x256xf32, #tpu.memory_space<vmem>>, %arg8: memref<1x4x256xf32, #tpu.memory_space<vmem>>, %arg9: memref<1x4x256xf32, #tpu.memory_space<vmem>>) attributes {dimension_semantics = [#tpu.dimension_semantics<parallel>], iteration_bounds = array<i64: 2>, scalar_prefetch = 0 : i64, scratch_operands = 0 : i64, tpu.core_type = #tpu.core_type<tc>, window_params = [{pipeline_mode = #tpu.pipeline_mode<synchronous>, transform_indices = @transform_0, window_bounds = array<i64: 4, 4, 16>}, {pipeline_mode = #tpu.pipeline_mode<synchronous>, transform_indices = @transform_1, window_bounds = array<i64: 1, 16>}, {pipeline_mode = #tpu.pipeline_mode<synchronous>, transform_indices = @transform_2, window_bounds = array<i64: 4, 4, 4>}, {pipeline_mode = #tpu.pipeline_mode<synchronous>, transform_indices = @transform_3, window_bounds = array<i64: 4, 4, 1>}, {transform_indices = @transform_4, window_bounds = array<i64: 1, 4, 256>}, {transform_indices = @transform_5, window_bounds = array<i64: 1, 4, 256>}, {transform_indices = @transform_6, window_bounds = array<i64: 1, 4, 256>}, {transform_indices = @transform_7, window_bounds = array<i64: 1, 4, 256>}, {transform_indices = @transform_8, window_bounds = array<i64: 1, 4, 256>}]} {
    %c0 = arith.constant 0 : index
    %c0_0 = arith.constant 0 : index
    %c0_1 = arith.constant 0 : index
    %0 = vector.load %arg5[%c0, %c0_0, %c0_1] : memref<1x4x256xf32, #tpu.memory_space<vmem>>, vector<1x4x256xf32>
    %1 = vector.shape_cast %0 : vector<1x4x256xf32> to vector<4x256xf32>
    %c0_2 = arith.constant 0 : index
    %c0_3 = arith.constant 0 : index
    %c0_4 = arith.constant 0 : index
    %2 = vector.load %arg6[%c0_2, %c0_3, %c0_4] : memref<1x4x256xf32, #tpu.memory_space<vmem>>, vector<1x4x256xf32>
    %3 = vector.shape_cast %2 : vector<1x4x256xf32> to vector<4x256xf32>
    %c0_5 = arith.constant 0 : index
    %c0_6 = arith.constant 0 : index
    %c0_7 = arith.constant 0 : index
    %4 = vector.load %arg7[%c0_5, %c0_6, %c0_7] : memref<1x4x256xf32, #tpu.memory_space<vmem>>, vector<1x4x256xf32>
    %5 = vector.shape_cast %4 : vector<1x4x256xf32> to vector<4x256xf32>
    %c0_8 = arith.constant 0 : index
    %c0_9 = arith.constant 0 : index
    %c0_10 = arith.constant 0 : index
    %6 = vector.load %arg8[%c0_8, %c0_9, %c0_10] : memref<1x4x256xf32, #tpu.memory_space<vmem>>, vector<1x4x256xf32>
    %7 = vector.shape_cast %6 : vector<1x4x256xf32> to vector<4x256xf32>
    %cst = arith.constant dense<0.000000e+00> : vector<4xf32>
    %8 = vector.multi_reduction <add>, %1, %cst [1] : vector<4x256xf32> to vector<4xf32>
    %9 = vector.shape_cast %8 : vector<4xf32> to vector<4x1xf32>
    %cst_11 = arith.constant 3.906250e-03 : f32
    %10 = vector.broadcast %cst_11 : f32 to vector<4x1xf32>
    %11 = arith.mulf %9, %10 : vector<4x1xf32>
    %cst_12 = arith.constant dense<0.000000e+00> : vector<4xf32>
    %12 = vector.multi_reduction <add>, %3, %cst_12 [1] : vector<4x256xf32> to vector<4xf32>
    %13 = vector.shape_cast %12 : vector<4xf32> to vector<4x1xf32>
    %cst_13 = arith.constant 3.906250e-03 : f32
    %14 = vector.broadcast %cst_13 : f32 to vector<4x1xf32>
    %15 = arith.mulf %13, %14 : vector<4x1xf32>
    %cst_14 = arith.constant dense<0.000000e+00> : vector<4xf32>
    %16 = vector.multi_reduction <add>, %5, %cst_14 [1] : vector<4x256xf32> to vector<4xf32>
    %17 = vector.shape_cast %16 : vector<4xf32> to vector<4x1xf32>
    %cst_15 = arith.constant 3.906250e-03 : f32
    %18 = vector.broadcast %cst_15 : f32 to vector<4x1xf32>
    %19 = arith.mulf %17, %18 : vector<4x1xf32>
    %cst_16 = arith.constant dense<0.000000e+00> : vector<4xf32>
    %20 = vector.multi_reduction <add>, %7, %cst_16 [1] : vector<4x256xf32> to vector<4xf32>
    %21 = vector.shape_cast %20 : vector<4xf32> to vector<4x1xf32>
    %cst_17 = arith.constant 3.906250e-03 : f32
    %22 = vector.broadcast %cst_17 : f32 to vector<4x1xf32>
    %23 = arith.mulf %21, %22 : vector<4x1xf32>
    %c0_18 = arith.constant 0 : index
    %c0_19 = arith.constant 0 : index
    %c0_20 = arith.constant 0 : index
    %24 = vector.load %arg1[%c0_18, %c0_19, %c0_20] : memref<4x4x16xf32, #tpu.memory_space<vmem>>, vector<1x4x16xf32>
    %25 = vector.shape_cast %24 : vector<1x4x16xf32> to vector<4x16xf32>
    %26 = vector.broadcast %11 : vector<4x1xf32> to vector<4x16xf32>
    %27 = arith.mulf %25, %26 : vector<4x16xf32>
    %cst_21 = arith.constant dense<0.000000e+00> : vector<16xf32>
    %28 = vector.multi_reduction <add>, %27, %cst_21 [0] : vector<4x16xf32> to vector<16xf32>
    %29 = vector.shape_cast %28 : vector<16xf32> to vector<1x16xf32>
    %c1 = arith.constant 1 : index
    %c0_22 = arith.constant 0 : index
    %c0_23 = arith.constant 0 : index
    %30 = vector.load %arg1[%c1, %c0_22, %c0_23] : memref<4x4x16xf32, #tpu.memory_space<vmem>>, vector<1x4x16xf32>
    %31 = vector.shape_cast %30 : vector<1x4x16xf32> to vector<4x16xf32>
    %32 = vector.broadcast %15 : vector<4x1xf32> to vector<4x16xf32>
    %33 = arith.mulf %31, %32 : vector<4x16xf32>
    %cst_24 = arith.constant dense<0.000000e+00> : vector<16xf32>
    %34 = vector.multi_reduction <add>, %33, %cst_24 [0] : vector<4x16xf32> to vector<16xf32>
    %35 = vector.shape_cast %34 : vector<16xf32> to vector<1x16xf32>
    %36 = arith.addf %29, %35 : vector<1x16xf32>
    %c2 = arith.constant 2 : index
    %c0_25 = arith.constant 0 : index
    %c0_26 = arith.constant 0 : index
    %37 = vector.load %arg1[%c2, %c0_25, %c0_26] : memref<4x4x16xf32, #tpu.memory_space<vmem>>, vector<1x4x16xf32>
    %38 = vector.shape_cast %37 : vector<1x4x16xf32> to vector<4x16xf32>
    %39 = vector.broadcast %19 : vector<4x1xf32> to vector<4x16xf32>
    %40 = arith.mulf %38, %39 : vector<4x16xf32>
    %cst_27 = arith.constant dense<0.000000e+00> : vector<16xf32>
    %41 = vector.multi_reduction <add>, %40, %cst_27 [0] : vector<4x16xf32> to vector<16xf32>
    %42 = vector.shape_cast %41 : vector<16xf32> to vector<1x16xf32>
    %43 = arith.addf %36, %42 : vector<1x16xf32>
    %c3 = arith.constant 3 : index
    %c0_28 = arith.constant 0 : index
    %c0_29 = arith.constant 0 : index
    %44 = vector.load %arg1[%c3, %c0_28, %c0_29] : memref<4x4x16xf32, #tpu.memory_space<vmem>>, vector<1x4x16xf32>
    %45 = vector.shape_cast %44 : vector<1x4x16xf32> to vector<4x16xf32>
    %46 = vector.broadcast %23 : vector<4x1xf32> to vector<4x16xf32>
    %47 = arith.mulf %45, %46 : vector<4x16xf32>
    %cst_30 = arith.constant dense<0.000000e+00> : vector<16xf32>
    %48 = vector.multi_reduction <add>, %47, %cst_30 [0] : vector<4x16xf32> to vector<16xf32>
    %49 = vector.shape_cast %48 : vector<16xf32> to vector<1x16xf32>
    %50 = arith.addf %43, %49 : vector<1x16xf32>
    %c0_31 = arith.constant 0 : index
    %c0_32 = arith.constant 0 : index
    %51 = vector.load %arg2[%c0_31, %c0_32] : memref<1x16xf32, #tpu.memory_space<vmem>>, vector<1x16xf32>
    %52 = arith.addf %50, %51 : vector<1x16xf32>
    %cst_33 = arith.constant 0.000000e+00 : f32
    %53 = vector.broadcast %cst_33 : f32 to vector<1x16xf32>
    %54 = arith.maximumf %52, %53 : vector<1x16xf32>
    %55 = vector.extract_strided_slice %54 {offsets = [0, 0], sizes = [1, 4], strides = [1, 1]} : vector<1x16xf32> to vector<1x4xf32>
    %c0_34 = arith.constant 0 : index
    %c0_35 = arith.constant 0 : index
    %c0_36 = arith.constant 0 : index
    %56 = vector.load %arg3[%c0_34, %c0_35, %c0_36] : memref<4x4x4xf32, #tpu.memory_space<vmem>>, vector<1x4x4xf32>
    %57 = vector.shape_cast %56 : vector<1x4x4xf32> to vector<4x4xf32>
    %58 = vector.broadcast %55 : vector<1x4xf32> to vector<4x4xf32>
    %59 = arith.mulf %57, %58 : vector<4x4xf32>
    %cst_37 = arith.constant dense<0.000000e+00> : vector<4xf32>
    %60 = vector.multi_reduction <add>, %59, %cst_37 [1] : vector<4x4xf32> to vector<4xf32>
    %61 = vector.shape_cast %60 : vector<4xf32> to vector<4x1xf32>
    %c0_38 = arith.constant 0 : index
    %c0_39 = arith.constant 0 : index
    %c0_40 = arith.constant 0 : index
    %62 = vector.load %arg4[%c0_38, %c0_39, %c0_40] : memref<4x4x1xf32, #tpu.memory_space<vmem>>, vector<1x4x1xf32>
    %63 = vector.shape_cast %62 : vector<1x4x1xf32> to vector<4x1xf32>
    %64 = arith.addf %61, %63 : vector<4x1xf32>
    %65 = arith.negf %64 : vector<4x1xf32>
    %66 = math.exp %65 : vector<4x1xf32>
    %cst_41 = arith.constant 1.000000e+00 : f32
    %67 = vector.broadcast %cst_41 : f32 to vector<4x1xf32>
    %68 = arith.addf %67, %66 : vector<4x1xf32>
    %69 = arith.divf %67, %68 : vector<4x1xf32>
    %70 = vector.extract_strided_slice %54 {offsets = [0, 4], sizes = [1, 4], strides = [1, 1]} : vector<1x16xf32> to vector<1x4xf32>
    %c1_42 = arith.constant 1 : index
    %c0_43 = arith.constant 0 : index
    %c0_44 = arith.constant 0 : index
    %71 = vector.load %arg3[%c1_42, %c0_43, %c0_44] : memref<4x4x4xf32, #tpu.memory_space<vmem>>, vector<1x4x4xf32>
    %72 = vector.shape_cast %71 : vector<1x4x4xf32> to vector<4x4xf32>
    %73 = vector.broadcast %70 : vector<1x4xf32> to vector<4x4xf32>
    %74 = arith.mulf %72, %73 : vector<4x4xf32>
    %cst_45 = arith.constant dense<0.000000e+00> : vector<4xf32>
    %75 = vector.multi_reduction <add>, %74, %cst_45 [1] : vector<4x4xf32> to vector<4xf32>
    %76 = vector.shape_cast %75 : vector<4xf32> to vector<4x1xf32>
    %c1_46 = arith.constant 1 : index
    %c0_47 = arith.constant 0 : index
    %c0_48 = arith.constant 0 : index
    %77 = vector.load %arg4[%c1_46, %c0_47, %c0_48] : memref<4x4x1xf32, #tpu.memory_space<vmem>>, vector<1x4x1xf32>
    %78 = vector.shape_cast %77 : vector<1x4x1xf32> to vector<4x1xf32>
    %79 = arith.addf %76, %78 : vector<4x1xf32>
    %80 = arith.negf %79 : vector<4x1xf32>
    %81 = math.exp %80 : vector<4x1xf32>
    %cst_49 = arith.constant 1.000000e+00 : f32
    %82 = vector.broadcast %cst_49 : f32 to vector<4x1xf32>
    %83 = arith.addf %82, %81 : vector<4x1xf32>
    %84 = arith.divf %82, %83 : vector<4x1xf32>
    %85 = vector.extract_strided_slice %54 {offsets = [0, 8], sizes = [1, 4], strides = [1, 1]} : vector<1x16xf32> to vector<1x4xf32>
    %c2_50 = arith.constant 2 : index
    %c0_51 = arith.constant 0 : index
    %c0_52 = arith.constant 0 : index
    %86 = vector.load %arg3[%c2_50, %c0_51, %c0_52] : memref<4x4x4xf32, #tpu.memory_space<vmem>>, vector<1x4x4xf32>
    %87 = vector.shape_cast %86 : vector<1x4x4xf32> to vector<4x4xf32>
    %88 = vector.broadcast %85 : vector<1x4xf32> to vector<4x4xf32>
    %89 = arith.mulf %87, %88 : vector<4x4xf32>
    %cst_53 = arith.constant dense<0.000000e+00> : vector<4xf32>
    %90 = vector.multi_reduction <add>, %89, %cst_53 [1] : vector<4x4xf32> to vector<4xf32>
    %91 = vector.shape_cast %90 : vector<4xf32> to vector<4x1xf32>
    %c2_54 = arith.constant 2 : index
    %c0_55 = arith.constant 0 : index
    %c0_56 = arith.constant 0 : index
    %92 = vector.load %arg4[%c2_54, %c0_55, %c0_56] : memref<4x4x1xf32, #tpu.memory_space<vmem>>, vector<1x4x1xf32>
    %93 = vector.shape_cast %92 : vector<1x4x1xf32> to vector<4x1xf32>
    %94 = arith.addf %91, %93 : vector<4x1xf32>
    %95 = arith.negf %94 : vector<4x1xf32>
    %96 = math.exp %95 : vector<4x1xf32>
    %cst_57 = arith.constant 1.000000e+00 : f32
    %97 = vector.broadcast %cst_57 : f32 to vector<4x1xf32>
    %98 = arith.addf %97, %96 : vector<4x1xf32>
    %99 = arith.divf %97, %98 : vector<4x1xf32>
    %100 = vector.extract_strided_slice %54 {offsets = [0, 12], sizes = [1, 4], strides = [1, 1]} : vector<1x16xf32> to vector<1x4xf32>
    %c3_58 = arith.constant 3 : index
    %c0_59 = arith.constant 0 : index
    %c0_60 = arith.constant 0 : index
    %101 = vector.load %arg3[%c3_58, %c0_59, %c0_60] : memref<4x4x4xf32, #tpu.memory_space<vmem>>, vector<1x4x4xf32>
    %102 = vector.shape_cast %101 : vector<1x4x4xf32> to vector<4x4xf32>
    %103 = vector.broadcast %100 : vector<1x4xf32> to vector<4x4xf32>
    %104 = arith.mulf %102, %103 : vector<4x4xf32>
    %cst_61 = arith.constant dense<0.000000e+00> : vector<4xf32>
    %105 = vector.multi_reduction <add>, %104, %cst_61 [1] : vector<4x4xf32> to vector<4xf32>
    %106 = vector.shape_cast %105 : vector<4xf32> to vector<4x1xf32>
    %c3_62 = arith.constant 3 : index
    %c0_63 = arith.constant 0 : index
    %c0_64 = arith.constant 0 : index
    %107 = vector.load %arg4[%c3_62, %c0_63, %c0_64] : memref<4x4x1xf32, #tpu.memory_space<vmem>>, vector<1x4x1xf32>
    %108 = vector.shape_cast %107 : vector<1x4x1xf32> to vector<4x1xf32>
    %109 = arith.addf %106, %108 : vector<4x1xf32>
    %110 = arith.negf %109 : vector<4x1xf32>
    %111 = math.exp %110 : vector<4x1xf32>
    %cst_65 = arith.constant 1.000000e+00 : f32
    %112 = vector.broadcast %cst_65 : f32 to vector<4x1xf32>
    %113 = arith.addf %112, %111 : vector<4x1xf32>
    %114 = arith.divf %112, %113 : vector<4x1xf32>
    %115 = vector.broadcast %69 : vector<4x1xf32> to vector<4x256xf32>
    %116 = arith.mulf %115, %1 : vector<4x256xf32>
    %117 = vector.broadcast %84 : vector<4x1xf32> to vector<4x256xf32>
    %118 = arith.mulf %117, %3 : vector<4x256xf32>
    %119 = arith.addf %116, %118 : vector<4x256xf32>
    %120 = vector.broadcast %99 : vector<4x1xf32> to vector<4x256xf32>
    %121 = arith.mulf %120, %5 : vector<4x256xf32>
    %122 = arith.addf %119, %121 : vector<4x256xf32>
    %123 = vector.broadcast %114 : vector<4x1xf32> to vector<4x256xf32>
    %124 = arith.mulf %123, %7 : vector<4x256xf32>
    %125 = arith.addf %122, %124 : vector<4x256xf32>
    %c0_66 = arith.constant 0 : index
    %c0_67 = arith.constant 0 : index
    %c0_68 = arith.constant 0 : index
    %126 = vector.load %arg9[%c0_66, %c0_67, %c0_68] : memref<1x4x256xf32, #tpu.memory_space<vmem>>, vector<1x4x256xf32>
    %127 = vector.shape_cast %126 : vector<1x4x256xf32> to vector<4x256xf32>
    %128 = vector.shape_cast %125 : vector<4x256xf32> to vector<1x4x256xf32>
    tpu.vector_store %arg9[%c0_66, %c0_67, %c0_68], %128 {strides = array<i32>} : memref<1x4x256xf32, #tpu.memory_space<vmem>>, vector<1x4x256xf32>,
    return
  }
  func.func @transform_0(%arg0: i32) -> (i32, i32, i32) {
    %c0_i32 = arith.constant 0 : i32
    %c0_i32_0 = arith.constant 0 : i32
    %c0_i32_1 = arith.constant 0 : i32
    %c0_i32_2 = arith.constant 0 : i32
    return %c0_i32, %c0_i32_0, %c0_i32_1 : i32, i32, i32
  }
  func.func @transform_1(%arg0: i32) -> (i32, i32) {
    %c0_i32 = arith.constant 0 : i32
    %c0_i32_0 = arith.constant 0 : i32
    %c0_i32_1 = arith.constant 0 : i32
    return %c0_i32, %c0_i32_0 : i32, i32
  }
  func.func @transform_2(%arg0: i32) -> (i32, i32, i32) {
    %c0_i32 = arith.constant 0 : i32
    %c0_i32_0 = arith.constant 0 : i32
    %c0_i32_1 = arith.constant 0 : i32
    %c0_i32_2 = arith.constant 0 : i32
    return %c0_i32, %c0_i32_0, %c0_i32_1 : i32, i32, i32
  }
  func.func @transform_3(%arg0: i32) -> (i32, i32, i32) {
    %c0_i32 = arith.constant 0 : i32
    %c0_i32_0 = arith.constant 0 : i32
    %c0_i32_1 = arith.constant 0 : i32
    %c0_i32_2 = arith.constant 0 : i32
    return %c0_i32, %c0_i32_0, %c0_i32_1 : i32, i32, i32
  }
  func.func @transform_4(%arg0: i32) -> (i32, i32, i32) {
    %c0_i32 = arith.constant 0 : i32
    %c0_i32_0 = arith.constant 0 : i32
    %c0_i32_1 = arith.constant 0 : i32
    return %arg0, %c0_i32, %c0_i32_0 : i32, i32, i32
  }
  func.func @transform_5(%arg0: i32) -> (i32, i32, i32) {
    %c0_i32 = arith.constant 0 : i32
    %c0_i32_0 = arith.constant 0 : i32
    %c0_i32_1 = arith.constant 0 : i32
    return %arg0, %c0_i32, %c0_i32_0 : i32, i32, i32
  }
  func.func @transform_6(%arg0: i32) -> (i32, i32, i32) {
    %c0_i32 = arith.constant 0 : i32
    %c0_i32_0 = arith.constant 0 : i32
    %c0_i32_1 = arith.constant 0 : i32
    return %arg0, %c0_i32, %c0_i32_0 : i32, i32, i32
  }
  func.func @transform_7(%arg0: i32) -> (i32, i32, i32) {
    %c0_i32 = arith.constant 0 : i32
    %c0_i32_0 = arith.constant 0 : i32
    %c0_i32_1 = arith.constant 0 : i32
    return %arg0, %c0_i32, %c0_i32_0 : i32, i32, i32
  }
  func.func @transform_8(%arg0: i32) -> (i32, i32, i32) {
    %c0_i32 = arith.constant 0 : i32
    %c0_i32_0 = arith.constant 0 : i32
    %c0_i32_1 = arith.constant 0 : i32
    return %arg0, %c0_i32, %c0_i32_0 : i32, i32, i32
  }
}

</mosaic_0001>

<llo_original>
// kernel: tpu_custom_call.1
$region0: #{tpu_custom_call.1}
  #allocation0 [shape = 'u32[]', space=smem, size = 0x4, offset = 0x4, fixed_abs, tag = 'smem constant byte address 0x4 - core index']
  #allocation1 [shape = 'u32[144,128]{1,0:T(1,128)}', space=vmem, size = 0x12000, scoped, tag = 'internal scratch']
  %s0 = inlined_call_operand.vmem [shape: f32[4,4,16], index: 0, kind: input, shape index: {}]
  %s1 = inlined_call_operand.vmem [shape: f32[1,16], index: 1, kind: input, shape index: {}]
  %s2 = inlined_call_operand.hbm [shape: f32[4,4,4], index: 2, kind: input, shape index: {}]
  %s3 = inlined_call_operand.vmem [shape: f32[4,4,1], index: 3, kind: input, shape index: {}]
  %s4 = inlined_call_operand.vmem [shape: f32[2,4,256], index: 4, kind: input, shape index: {}]
  %s5 = inlined_call_operand.hbm [shape: f32[2,4,256], index: 5, kind: input, shape index: {}]
  %s6 = inlined_call_operand.hbm [shape: f32[2,4,256], index: 6, kind: input, shape index: {}]
  %s7 = inlined_call_operand.hbm [shape: f32[2,4,256], index: 7, kind: input, shape index: {}]
  %s8 = inlined_call_operand.hbm [shape: f32[2,4,256], index: 8, kind: output, shape index: {}]
  %s9 = sld [smem:[#allocation0]]
  $region81: #{tpu_custom_call.1} parent=0
    _
  %s11 = ssub.s32 1, %s9
  %s12 = scalar_select 0, %s11, %s9
  $region1: #{tpu_custom_call.1} parent=0
    #allocation2 [shape = 'u8[8192]{0}', space=vmem, size = 0x2000, scoped, tag = 'input window, operand 2, single buffered']
    #allocation3 [shape = 's32[2]{0}', space=sflag, size = 0x8, scoped, tag = 'scoped memory for tpu_custom_call.1']
    #allocation4 [shape = 's32[2]{0}', space=sflag, size = 0x8, scoped, tag = 'scoped memory for tpu_custom_call.1']
    #allocation5 [shape = 'u8[8192]{0}', space=vmem, size = 0x2000, scoped, tag = 'input window, operand 5']
    #allocation6 [shape = 's32[2]{0}', space=sflag, size = 0x8, scoped, tag = 'scoped memory for tpu_custom_call.1']
    #allocation7 [shape = 'u8[8192]{0}', space=vmem, size = 0x2000, scoped, tag = 'input window, operand 6']
    #allocation8 [shape = 'u8[8192]{0}', space=vmem, size = 0x2000, scoped, tag = 'input window, operand 7']
    #allocation9 [shape = 's32[2]{0}', space=sflag, size = 0x8, scoped, tag = 'scoped memory for tpu_custom_call.1']
    #allocation10 [shape = 'u8[8192]{0}', space=vmem, size = 0x2000, scoped, tag = 'output window, operand 0']
    %13 = vsyncpa [#allocation3], 0
    %14 = vsyncpa [#allocation6], 0
    %s15 = scalar_lea.sflag [#allocation6], 1
    %16 = vsyncpa %s15, 0
    %17 = vsyncpa [#allocation9], 0
    %s18 = scalar_lea.sflag [#allocation9], 1
    %19 = vsyncpa %s18, 0
    %20 = vsyncpa [#allocation4], 0
    %s21 = scalar_lea.sflag [#allocation4], 1
    %22 = vsyncpa %s21, 0
    loop: start=0, step=1, limit=4
    $region2: #{tpu_custom_call.1} parent=1 // loop_pre_header
      _
    $region3: #{tpu_custom_call.1} parent=1 // loop_header
      %s24 = sphi 0, %s28
      %p25 = scmp.ge.s32.totalorder %s24, 4
      %s32 = sphi 0, %s32
      %s34 = sphi 0, %s32
      %s35 = sphi 0, %s34
      %s49 = sphi 0, %s35
      %s53 = sphi 0, %s53
      %s55 = sphi 0, %s53
      %s56 = sphi 0, %s55
      %s70 = sphi 0, %s56
      %s74 = sphi 0, %s74
      %s76 = sphi 0, %s74
      %s77 = sphi 0, %s76
      %s91 = sphi 0, %s77
      %s95 = sphi 0, %s95
      %s97 = sphi 0, %s95
      %s98 = sphi 0, %s97
      %s112 = sphi 0, %s98
      %s118 = sphi 0, %s120
      %s121 = sphi 0, %s118
      %s122 = sphi 0, %s121
      %s138 = sphi 0, %s122
      %s144 = sphi 0, %s146
      %s147 = sphi 0, %s144
      %s148 = sphi 0, %s147
      %s164 = sphi 0, %s148
      %s170 = sphi 0, %s172
      %s173 = sphi 0, %s170
      %s174 = sphi 0, %s173
      %s190 = sphi 0, %s174
      %s196 = sphi 0, %s198
      %s199 = sphi 0, %s196
      %s200 = sphi 0, %s199
      %s216 = sphi 0, %s200
      %s222 = sphi 0, %s224
      %s225 = sphi 0, %s222
      %s226 = sphi 0, %s225
      %s242 = sphi 0, %s226
    $region4: #{tpu_custom_call.1} parent=1 // loop_header_branch
      %27 = sbr.rel (%p25) target = $region8
    $region5: #{tpu_custom_call.1} parent=1 // loop_body
      %s29 = ssub.s32 %s24, 1
      %s30 = ssub.s32 %s24, 2
      %s31 = sadd.s32 %s24, 1
      %s33 = sadd.s32 %s32, 1
      %p36 = scmp.eq.s32.totalorder %s24, 1
      %p37 = scmp.ne.s32.totalorder %s32, %s34
      %p38 = scmp.eq.s32.totalorder %s24, 0
      %p39 = por %p37, %p38
      %p40 = scmp.ne.s32.totalorder %s32, %s34
      %p41 = scmp.eq.s32.totalorder %s29, 1
      %p42 = por %p40, %p41
      %p43 = scmp.ne.s32.totalorder %s34, %s35
      %p44 = scmp.eq.s32.totalorder %s29, 0
      %p45 = por %p43, %p44
      %p46 = scmp.ne.s32.totalorder %s34, %s35
      %p47 = scmp.eq.s32.totalorder %s30, 1
      %p48 = por %p46, %p47
      %p50 = scmp.ne.s32.totalorder %s35, %s49
      %p51 = scmp.eq.s32.totalorder %s30, 0
      %p52 = por %p50, %p51
      %s54 = sadd.s32 %s53, 1
      %p57 = scmp.eq.s32.totalorder %s24, 1
      %p58 = scmp.ne.s32.totalorder %s53, %s55
      %p59 = scmp.eq.s32.totalorder %s24, 0
      %p60 = por %p58, %p59
      %p61 = scmp.ne.s32.totalorder %s53, %s55
      %p62 = scmp.eq.s32.totalorder %s29, 1
      %p63 = por %p61, %p62
      %p64 = scmp.ne.s32.totalorder %s55, %s56
      %p65 = scmp.eq.s32.totalorder %s29, 0
      %p66 = por %p64, %p65
      %p67 = scmp.ne.s32.totalorder %s55, %s56
      %p68 = scmp.eq.s32.totalorder %s30, 1
      %p69 = por %p67, %p68
      %p71 = scmp.ne.s32.totalorder %s56, %s70
      %p72 = scmp.eq.s32.totalorder %s30, 0
      %p73 = por %p71, %p72
      %s75 = sadd.s32 %s74, 1
      %p78 = scmp.eq.s32.totalorder %s24, 1
      %p79 = scmp.ne.s32.totalorder %s74, %s76
      %p80 = scmp.eq.s32.totalorder %s24, 0
      %p81 = por %p79, %p80
      %p82 = scmp.ne.s32.totalorder %s74, %s76
      %p83 = scmp.eq.s32.totalorder %s29, 1
      %p84 = por %p82, %p83
      %p85 = scmp.ne.s32.totalorder %s76, %s77
      %p86 = scmp.eq.s32.totalorder %s29, 0
      %p87 = por %p85, %p86
      %p88 = scmp.ne.s32.totalorder %s76, %s77
      %p89 = scmp.eq.s32.totalorder %s30, 1
      %p90 = por %p88, %p89
      %p92 = scmp.ne.s32.totalorder %s77, %s91
      %p93 = scmp.eq.s32.totalorder %s30, 0
      %p94 = por %p92, %p93
      %s96 = sadd.s32 %s95, 1
      %p99 = scmp.eq.s32.totalorder %s24, 1
      %p100 = scmp.ne.s32.totalorder %s95, %s97
      %p101 = scmp.eq.s32.totalorder %s24, 0
      %p102 = por %p100, %p101
      %p103 = scmp.ne.s32.totalorder %s95, %s97
      %p104 = scmp.eq.s32.totalorder %s29, 1
      %p105 = por %p103, %p104
      %p106 = scmp.ne.s32.totalorder %s97, %s98
      %p107 = scmp.eq.s32.totalorder %s29, 0
      %p108 = por %p106, %p107
      %p109 = scmp.ne.s32.totalorder %s97, %s98
      %p110 = scmp.eq.s32.totalorder %s30, 1
      %p111 = por %p109, %p110
      %p113 = scmp.ne.s32.totalorder %s98, %s112
      %p114 = scmp.eq.s32.totalorder %s30, 0
      %p115 = por %p113, %p114
      %s116 = ssub.s32 %s24, %s31
      %p117 = scmp.eq.s32.totalorder %s116, 0
      %s119 = sadd.s32 %s118, 1
      %s120 = scalar_select %p117, %s118, %s119
      %p123 = pneg %p117
      %p124 = scmp.eq.s32.totalorder %s24, 1
      %p125 = por %p123, %p124
      %p126 = scmp.ne.s32.totalorder %s118, %s121
      %p127 = scmp.eq.s32.totalorder %s24, 0
      %p128 = por %p126, %p127
      %p129 = scmp.ne.s32.totalorder %s118, %s121
      %p130 = scmp.eq.s32.totalorder %s29, 1
      %p131 = por %p129, %p130
      %p132 = scmp.ne.s32.totalorder %s121, %s122
      %p133 = scmp.eq.s32.totalorder %s29, 0
      %p134 = por %p132, %p133
      %p135 = scmp.ne.s32.totalorder %s121, %s122
      %p136 = scmp.eq.s32.totalorder %s30, 1
      %p137 = por %p135, %p136
      %p139 = scmp.ne.s32.totalorder %s122, %s138
      %p140 = scmp.eq.s32.totalorder %s30, 0
      %p141 = por %p139, %p140
      %s142 = ssub.s32 %s24, %s31
      %p143 = scmp.eq.s32.totalorder %s142, 0
      %s145 = sadd.s32 %s144, 1
      %s146 = scalar_select %p143, %s144, %s145
      %p149 = pneg %p143
      %p150 = scmp.eq.s32.totalorder %s24, 1
      %p151 = por %p149, %p150
      %p152 = scmp.ne.s32.totalorder %s144, %s147
      %p153 = scmp.eq.s32.totalorder %s24, 0
      %p154 = por %p152, %p153
      %p155 = scmp.ne.s32.totalorder %s144, %s147
      %p156 = scmp.eq.s32.totalorder %s29, 1
      %p157 = por %p155, %p156
      %p158 = scmp.ne.s32.totalorder %s147, %s148
      %p159 = scmp.eq.s32.totalorder %s29, 0
      %p160 = por %p158, %p159
      %p161 = scmp.ne.s32.totalorder %s147, %s148
      %p162 = scmp.eq.s32.totalorder %s30, 1
      %p163 = por %p161, %p162
      %p165 = scmp.ne.s32.totalorder %s148, %s164
      %p166 = scmp.eq.s32.totalorder %s30, 0
      %p167 = por %p165, %p166
      %s168 = ssub.s32 %s24, %s31
      %p169 = scmp.eq.s32.totalorder %s168, 0
      %s171 = sadd.s32 %s170, 1
      %s172 = scalar_select %p169, %s170, %s171
      %p175 = pneg %p169
      %p176 = scmp.eq.s32.totalorder %s24, 1
      %p177 = por %p175, %p176
      %p178 = scmp.ne.s32.totalorder %s170, %s173
      %p179 = scmp.eq.s32.totalorder %s24, 0
      %p180 = por %p178, %p179
      %p181 = scmp.ne.s32.totalorder %s170, %s173
      %p182 = scmp.eq.s32.totalorder %s29, 1
      %p183 = por %p181, %p182
      %p184 = scmp.ne.s32.totalorder %s173, %s174
      %p185 = scmp.eq.s32.totalorder %s29, 0
      %p186 = por %p184, %p185
      %p187 = scmp.ne.s32.totalorder %s173, %s174
      %p188 = scmp.eq.s32.totalorder %s30, 1
      %p189 = por %p187, %p188
      %p191 = scmp.ne.s32.totalorder %s174, %s190
      %p192 = scmp.eq.s32.totalorder %s30, 0
      %p193 = por %p191, %p192
      %s194 = ssub.s32 %s24, %s31
      %p195 = scmp.eq.s32.totalorder %s194, 0
      %s197 = sadd.s32 %s196, 1
      %s198 = scalar_select %p195, %s196, %s197
      %p201 = pneg %p195
      %p202 = scmp.eq.s32.totalorder %s24, 1
      %p203 = por %p201, %p202
      %p204 = scmp.ne.s32.totalorder %s196, %s199
      %p205 = scmp.eq.s32.totalorder %s24, 0
      %p206 = por %p204, %p205
      %p207 = scmp.ne.s32.totalorder %s196, %s199
      %p208 = scmp.eq.s32.totalorder %s29, 1
      %p209 = por %p207, %p208
      %p210 = scmp.ne.s32.totalorder %s199, %s200
      %p211 = scmp.eq.s32.totalorder %s29, 0
      %p212 = por %p210, %p211
      %p213 = scmp.ne.s32.totalorder %s199, %s200
      %p214 = scmp.eq.s32.totalorder %s30, 1
      %p215 = por %p213, %p214
      %p217 = scmp.ne.s32.totalorder %s200, %s216
      %p218 = scmp.eq.s32.totalorder %s30, 0
      %p219 = por %p217, %p218
      %s220 = ssub.s32 %s24, %s31
      %p221 = scmp.eq.s32.totalorder %s220, 0
      %s223 = sadd.s32 %s222, 1
      %s224 = scalar_select %p221, %s222, %s223
      %p227 = pneg %p221
      %p228 = scmp.eq.s32.totalorder %s24, 1
      %p229 = por %p227, %p228
      %p230 = scmp.ne.s32.totalorder %s222, %s225
      %p231 = scmp.eq.s32.totalorder %s24, 0
      %p232 = por %p230, %p231
      %p233 = scmp.ne.s32.totalorder %s222, %s225
      %p234 = scmp.eq.s32.totalorder %s29, 1
      %p235 = por %p233, %p234
      %p236 = scmp.ne.s32.totalorder %s225, %s226
      %p237 = scmp.eq.s32.totalorder %s29, 0
      %p238 = por %p236, %p237
      %p239 = scmp.ne.s32.totalorder %s225, %s226
      %p240 = scmp.eq.s32.totalorder %s30, 1
      %p241 = por %p239, %p240
      %p243 = scmp.ne.s32.totalorder %s226, %s242
      %p244 = scmp.eq.s32.totalorder %s30, 0
      %p245 = por %p243, %p244
      %p246 = scmp.le.s32.totalorder 1, %s24
      %p247 = scmp.lt.s32.totalorder %s24, 3
      %p248 = pnand %p246, %p247
      %p249 = pneg %p248
      // Predicated region
      $region9: #{tpu_custom_call.1} parent=5 // pred_check
        _
      $region10: #{tpu_custom_call.1} parent=5 // pred_check_branch
        %251 = sbr.rel (%p248) target = $region12
      $region11: #{tpu_custom_call.1} parent=5 // pred_region
        %s252 = ssub.s32 %s24, 1
        // Predicated region
        $region13: #{tpu_custom_call.1} parent=11 // pred_check
          %p253 = pneg %p45
        $region14: #{tpu_custom_call.1} parent=11 // pred_check_branch
          %255 = sbr.rel (%p253) target = $region16
        $region15: #{tpu_custom_call.1} parent=11 // pred_region
          _
        $region16: #{tpu_custom_call.1} parent=11 // pred_fallthru
          _
        // Predicated region
        $region17: #{tpu_custom_call.1} parent=11 // pred_check
          %p256 = pneg %p66
        $region18: #{tpu_custom_call.1} parent=11 // pred_check_branch
          %258 = sbr.rel (%p256) target = $region20
        $region19: #{tpu_custom_call.1} parent=11 // pred_region
          _
        $region20: #{tpu_custom_call.1} parent=11 // pred_fallthru
          _
        // Predicated region
        $region21: #{tpu_custom_call.1} parent=11 // pred_check
          %p259 = pneg %p87
        $region22: #{tpu_custom_call.1} parent=11 // pred_check_branch
          %261 = sbr.rel (%p259) target = $region24
        $region23: #{tpu_custom_call.1} parent=11 // pred_region
          %s263 = ssub.s32 256, 256
          %264 = vsyncadd [#allocation3], %s263
          %s265 = sshll.u32 [#allocation2], 4
          %s266 = int_to_ptr.vmem [resolvable:$true] %s265
          %271 = dma.hbm_to_vmem [thread:$0]  %s2, 256, %s266, [#allocation3], 64, 64, 4
        $region24: #{tpu_custom_call.1} parent=11 // pred_fallthru
          _
        // Predicated region
        $region25: #{tpu_custom_call.1} parent=11 // pred_check
          %p272 = pneg %p108
        $region26: #{tpu_custom_call.1} parent=11 // pred_check_branch
          %274 = sbr.rel (%p272) target = $region28
        $region27: #{tpu_custom_call.1} parent=11 // pred_region
          _
        $region28: #{tpu_custom_call.1} parent=11 // pred_fallthru
          _
      $region12: #{tpu_custom_call.1} parent=5 // pred_fallthru
        _
      %p275 = scmp.lt.s32.totalorder %s24, 2
      // Predicated region
      $region29: #{tpu_custom_call.1} parent=5 // pred_check
        %p276 = pneg %p275
      $region30: #{tpu_custom_call.1} parent=5 // pred_check_branch
        %278 = sbr.rel (%p276) target = $region32
      $region31: #{tpu_custom_call.1} parent=5 // pred_region
        // Predicated region
        $region33: #{tpu_custom_call.1} parent=31 // pred_check
          %p279 = pneg %p128
        $region34: #{tpu_custom_call.1} parent=31 // pred_check_branch
          %281 = sbr.rel (%p279) target = $region36
        $region35: #{tpu_custom_call.1} parent=31 // pred_region
          %p282 = scmp.lt.s32.totalorder %s24, 1
          %s283 = scalar_select %p282, %s24, 1
          %s284 = smul.addr %s283, 2
          %s285 = smul.addr %s284, 4
          %s286 = scalar_lea.vmem %s4, %s285
        $region36: #{tpu_custom_call.1} parent=31 // pred_fallthru
          _
        // Predicated region
        $region37: #{tpu_custom_call.1} parent=31 // pred_check
          %p287 = pneg %p154
        $region38: #{tpu_custom_call.1} parent=31 // pred_check_branch
          %289 = sbr.rel (%p287) target = $region40
        $region39: #{tpu_custom_call.1} parent=31 // pred_region
          %s290 = sand.u32 %s24, 1
          %s291 = scalar_lea.sflag [#allocation6], %s290
          %s292 = sand.u32 %s144, 1
          %s293 = smul.addr %s292, 8
          %s294 = scalar_lea.vmem [#allocation5], %s293
          %s296 = ssub.s32 128, 128
          %297 = vsyncadd %s291, %s296
          %s298 = smul.addr %s24, 2
          %s299 = smul.addr %s298, 64
          %s300 = scalar_lea.hbm %s5, %s299
          %s302 = sshll.u32 %s294, 4
          %s303 = int_to_ptr.vmem [resolvable:$true] %s302
          %305 = dma.hbm_to_vmem [thread:$0]  %s300, 128, %s303, %s291
        $region40: #{tpu_custom_call.1} parent=31 // pred_fallthru
          _
        // Predicated region
        $region41: #{tpu_custom_call.1} parent=31 // pred_check
          %p306 = pneg %p180
        $region42: #{tpu_custom_call.1} parent=31 // pred_check_branch
          %308 = sbr.rel (%p306) target = $region44
        $region43: #{tpu_custom_call.1} parent=31 // pred_region
          %s309 = sand.u32 %s24, 1
          %s310 = scalar_lea.sflag [#allocation6], %s309
          %s311 = sand.u32 %s170, 1
          %s312 = smul.addr %s311, 8
          %s313 = scalar_lea.vmem [#allocation7], %s312
          %s315 = ssub.s32 128, 128
          %316 = vsyncadd %s310, %s315
          %s317 = smul.addr %s24, 2
          %s318 = smul.addr %s317, 64
          %s319 = scalar_lea.hbm %s6, %s318
          %s321 = sshll.u32 %s313, 4
          %s322 = int_to_ptr.vmem [resolvable:$true] %s321
          %324 = dma.hbm_to_vmem [thread:$0]  %s319, 128, %s322, %s310
        $region44: #{tpu_custom_call.1} parent=31 // pred_fallthru
          _
        // Predicated region
        $region45: #{tpu_custom_call.1} parent=31 // pred_check
          %p325 = pneg %p206
        $region46: #{tpu_custom_call.1} parent=31 // pred_check_branch
          %327 = sbr.rel (%p325) target = $region48
        $region47: #{tpu_custom_call.1} parent=31 // pred_region
          %s328 = sand.u32 %s196, 1
          %s329 = scalar_lea.sflag [#allocation9], %s328
          %s330 = sand.u32 %s196, 1
          %s331 = smul.addr %s330, 8
          %s332 = scalar_lea.vmem [#allocation8], %s331
          %s334 = ssub.s32 128, 128
          %335 = vsyncadd %s329, %s334
          %s336 = smul.addr %s24, 2
          %s337 = smul.addr %s336, 64
          %s338 = scalar_lea.hbm %s7, %s337
          %s340 = sshll.u32 %s332, 4
          %s341 = int_to_ptr.vmem [resolvable:$true] %s340
          %343 = dma.hbm_to_vmem [thread:$0]  %s338, 128, %s341, %s329
        $region48: #{tpu_custom_call.1} parent=31 // pred_fallthru
          _
      $region32: #{tpu_custom_call.1} parent=5 // pred_fallthru
        _
      %p344 = scmp.le.s32.totalorder 1, %s24
      %p345 = scmp.lt.s32.totalorder %s24, 3
      %p346 = pnand %p344, %p345
      %p347 = pneg %p346
      // Predicated region
      $region49: #{tpu_custom_call.1} parent=5 // pred_check
        _
      $region50: #{tpu_custom_call.1} parent=5 // pred_check_branch
        %349 = sbr.rel (%p346) target = $region52
      $region51: #{tpu_custom_call.1} parent=5 // pred_region
        %s350 = ssub.s32 %s24, 1
        // Predicated region
        $region53: #{tpu_custom_call.1} parent=51 // pred_check
          %p351 = pneg %p87
        $region54: #{tpu_custom_call.1} parent=51 // pred_check_branch
          %353 = sbr.rel (%p351) target = $region56
        $region55: #{tpu_custom_call.1} parent=51 // pred_region
          %354 = dma.done [#allocation3], 256
        $region56: #{tpu_custom_call.1} parent=51 // pred_fallthru
          _
        %s355 = sand.u32 %s29, 1
        %s356 = scalar_lea.sflag [#allocation6], %s355
        %s357 = sand.u32 %s147, 1
        %s358 = smul.addr %s357, 8
        %s359 = scalar_lea.vmem [#allocation5], %s358
        // Predicated region
        $region57: #{tpu_custom_call.1} parent=51 // pred_check
          %p360 = pneg %p160
        $region58: #{tpu_custom_call.1} parent=51 // pred_check_branch
          %362 = sbr.rel (%p360) target = $region60
        $region59: #{tpu_custom_call.1} parent=51 // pred_region
          %363 = dma.done %s356, 128
        $region60: #{tpu_custom_call.1} parent=51 // pred_fallthru
          _
        %s364 = sand.u32 %s29, 1
        %s365 = scalar_lea.sflag [#allocation6], %s364
        %s366 = sand.u32 %s173, 1
        %s367 = smul.addr %s366, 8
        %s368 = scalar_lea.vmem [#allocation7], %s367
        // Predicated region
        $region61: #{tpu_custom_call.1} parent=51 // pred_check
          %p369 = pneg %p186
        $region62: #{tpu_custom_call.1} parent=51 // pred_check_branch
          %371 = sbr.rel (%p369) target = $region64
        $region63: #{tpu_custom_call.1} parent=51 // pred_region
          %372 = dma.done %s365, 128
        $region64: #{tpu_custom_call.1} parent=51 // pred_fallthru
          _
        %s373 = sand.u32 %s199, 1
        %s374 = scalar_lea.sflag [#allocation9], %s373
        %s375 = sand.u32 %s199, 1
        %s376 = smul.addr %s375, 8
        %s377 = scalar_lea.vmem [#allocation8], %s376
        // Predicated region
        $region65: #{tpu_custom_call.1} parent=51 // pred_check
          %p378 = pneg %p212
        $region66: #{tpu_custom_call.1} parent=51 // pred_check_branch
          %380 = sbr.rel (%p378) target = $region68
        $region67: #{tpu_custom_call.1} parent=51 // pred_region
          %381 = dma.done %s374, 128
        $region68: #{tpu_custom_call.1} parent=51 // pred_fallthru
          _
        %p382 = pneg %p45
        %p383 = pneg %p42
        %p384 = pneg %p66
        %p385 = pneg %p63
        %p386 = pneg %p87
        %p387 = pneg %p84
        %p388 = pneg %p108
        %p389 = pneg %p105
        %p390 = scmp.lt.s32.totalorder %s29, 1
        %s391 = scalar_select %p390, %s29, 1
        %s392 = smul.addr %s391, 2
        %s393 = smul.addr %s392, 4
        %s394 = scalar_lea.vmem %s4, %s393
        %p395 = pneg %p134
        %p396 = pneg %p131
        %s397 = sand.u32 %s29, 1
        %s398 = scalar_lea.sflag [#allocation6], %s397
        %s399 = sand.u32 %s147, 1
        %s400 = smul.addr %s399, 8
        %s401 = scalar_lea.vmem [#allocation5], %s400
        %p402 = pneg %p160
        %p403 = pneg %p157
        %s404 = sand.u32 %s29, 1
        %s405 = scalar_lea.sflag [#allocation6], %s404
        %s406 = sand.u32 %s173, 1
        %s407 = smul.addr %s406, 8
        %s408 = scalar_lea.vmem [#allocation7], %s407
        %p409 = pneg %p186
        %p410 = pneg %p183
        %s411 = sand.u32 %s199, 1
        %s412 = scalar_lea.sflag [#allocation9], %s411
        %s413 = sand.u32 %s199, 1
        %s414 = smul.addr %s413, 8
        %s415 = scalar_lea.vmem [#allocation8], %s414
        %p416 = pneg %p212
        %p417 = pneg %p209
        %p418 = pneg %p238
        %p419 = pneg %p235
        %s420 = sand.u32 %s225, 1
        %s421 = scalar_lea.sflag [#allocation4], %s420
        %s422 = sand.u32 %s225, 1
        %s423 = smul.addr %s422, 8
        %s424 = scalar_lea.vmem [#allocation10], %s423
        %p425 = scmp.lt.s32.totalorder %s29, 1
        %s426 = scalar_select %p425, %s29, 1
        %s427 = smul.addr %s426, 2
        %s428 = smul.addr %s427, 4
        %s429 = scalar_lea.vmem %s4, %s428
        %v430 = vld [vmem:[%s429] sm:$0xff]
        %v431 = vld [vmem:[%s359] sm:$0xff]
        %v432 = vld [vmem:[%s368] sm:$0xff]
        %v433 = vld [vmem:[%s377] sm:$0xff]
        %v435 = vcombine.high %v430, %v430
        %vm437 = vcmask 1043456
        %v438 = vsel %vm437, %v430, 0.0
        %v439 = vsel %vm437, %v435, 0.0
        %v440 = vadd.f32 %v438, %v439
        %441 = vadd.xlane.f32.xlu0 %v440
        %v442 = vpop.xlane.xlu0 %441
        %v443 = vmul.f32 %v442, 0.00390625
        %v445 = vcombine.high %v431, %v431
        %v447 = vsel %vm437, %v431, 0.0
        %v448 = vsel %vm437, %v445, 0.0
        %v449 = vadd.f32 %v447, %v448
        %450 = vadd.xlane.f32.xlu0 %v449
        %v451 = vpop.xlane.xlu0 %450
        %v452 = vmul.f32 %v451, 0.00390625
        %v454 = vcombine.high %v432, %v432
        %v456 = vsel %vm437, %v432, 0.0
        %v457 = vsel %vm437, %v454, 0.0
        %v458 = vadd.f32 %v456, %v457
        %459 = vadd.xlane.f32.xlu0 %v458
        %v460 = vpop.xlane.xlu0 %459
        %v461 = vmul.f32 %v460, 0.00390625
        %v463 = vcombine.high %v433, %v433
        %v465 = vsel %vm437, %v433, 0.0
        %v466 = vsel %vm437, %v463, 0.0
        %v467 = vadd.f32 %v465, %v466
        %468 = vadd.xlane.f32.xlu0 %v467
        %v469 = vpop.xlane.xlu0 %468
        %v470 = vmul.f32 %v469, 0.00390625
        %v471 = vld [vmem:[%s0] sm:$0xf]
        %v472 = vmul.f32 %v471, %v443
        %vm473 = vcmask 125952
        %v474 = vsel %vm473, %v472, 0.0
        %v475 = vrot.slane %v474, 4
        %v476 = vadd.f32 %v474, %v475
        %v477 = vrot.slane %v476, 2
        %v478 = vadd.f32 %v476, %v477
        %v479 = vrot.slane %v478, 1
        %v480 = vadd.f32 %v478, %v479
        %s481 = scalar_lea.vmem %s0, 4
        %v482 = vld [vmem:[%s481] sm:$0xf]
        %v483 = vmul.f32 %v482, %v452
        %v484 = vsel %vm473, %v483, 0.0
        %v485 = vrot.slane %v484, 4
        %v486 = vadd.f32 %v484, %v485
        %v487 = vrot.slane %v486, 2
        %v488 = vadd.f32 %v486, %v487
        %v489 = vrot.slane %v488, 1
        %v490 = vadd.f32 %v488, %v489
        %v491 = vadd.f32 %v480, %v490
        %s492 = scalar_lea.vmem %s0, 8
        %v493 = vld [vmem:[%s492] sm:$0xf]
        %v494 = vmul.f32 %v493, %v461
        %v495 = vsel %vm473, %v494, 0.0
        %v496 = vrot.slane %v495, 4
        %v497 = vadd.f32 %v495, %v496
        %v498 = vrot.slane %v497, 2
        %v499 = vadd.f32 %v497, %v498
        %v500 = vrot.slane %v499, 1
        %v501 = vadd.f32 %v499, %v500
        %v502 = vadd.f32 %v491, %v501
        %s503 = scalar_lea.vmem %s0, 12
        %v504 = vld [vmem:[%s503] sm:$0xf]
        %v505 = vmul.f32 %v504, %v470
        %v506 = vsel %vm473, %v505, 0.0
        %v507 = vrot.slane %v506, 4
        %v508 = vadd.f32 %v506, %v507
        %v509 = vrot.slane %v508, 2
        %v510 = vadd.f32 %v508, %v509
        %v511 = vrot.slane %v510, 1
        %v512 = vadd.f32 %v510, %v511
        %v513 = vadd.f32 %v502, %v512
        %v514 = vld [vmem:[%s1] sm:$0x1]
        %v515 = vadd.f32 %v513, %v514
        %v516 = vmax.f32 %v515, 0.0
        %v517 = vld [vmem:[#allocation2] sm:$0xf]
        %v518 = vlaneseq
        %v519 = vshrl.u32 %v518, 7
        %v520 = vsub.s32 0, %v519
        %v521 = vrot.slane %v516, %v520
        %v522 = vmul.f32 %v517, %v521
        %vm523 = vcmask 27648
        %v524 = vsel %vm523, %v522, 0.0
        %525 = vadd.xlane.f32.xlu0 %v524
        %v526 = vpop.xlane.xlu0 %525
        %v527 = vld [vmem:[%s3] sm:$0xf]
        %v528 = vadd.f32 %v526, %v527
        %v529 = vxor.u32 %v528, 2147483648
        %v530 = vmul.f32 %v529, 1.442695
        %v531 = vpow.pop %v530
        %v532 = vadd.f32 %v531, 1.0
        %v533 = vrcp.pop %v532
        %v534 = vmul.f32 1.0, %v533
        %s535 = scalar_lea.vmem [#allocation2], 4
        %v536 = vld [vmem:[%s535] sm:$0xf]
        %538 = vrot.lane.b32.xlu0 %v521, 124
        %v539 = vpop.permute.xlu0 %538
        %v541 = vmul.f32 %v536, %v539
        %v542 = vsel %vm523, %v541, 0.0
        %543 = vadd.xlane.f32.xlu0 %v542
        %v544 = vpop.xlane.xlu0 %543
        %s545 = scalar_lea.vmem %s3, 4
        %v546 = vld [vmem:[%s545] sm:$0xf]
        %v547 = vadd.f32 %v544, %v546
        %v548 = vxor.u32 %v547, 2147483648
        %v549 = vmul.f32 %v548, 1.442695
        %v550 = vpow.pop %v549
        %v551 = vadd.f32 %v550, 1.0
        %v552 = vrcp.pop %v551
        %v553 = vmul.f32 1.0, %v552
        %s554 = scalar_lea.vmem [#allocation2], 8
        %v555 = vld [vmem:[%s554] sm:$0xf]
        %556 = vrot.lane.b32.xlu0 %v521, 120
        %v557 = vpop.permute.xlu0 %556
        %v559 = vmul.f32 %v555, %v557
        %v560 = vsel %vm523, %v559, 0.0
        %561 = vadd.xlane.f32.xlu0 %v560
        %v562 = vpop.xlane.xlu0 %561
        %s563 = scalar_lea.vmem %s3, 8
        %v564 = vld [vmem:[%s563] sm:$0xf]
        %v565 = vadd.f32 %v562, %v564
        %v566 = vxor.u32 %v565, 2147483648
        %v567 = vmul.f32 %v566, 1.442695
        %v568 = vpow.pop %v567
        %v569 = vadd.f32 %v568, 1.0
        %v570 = vrcp.pop %v569
        %v571 = vmul.f32 1.0, %v570
        %s572 = scalar_lea.vmem [#allocation2], 12
        %v573 = vld [vmem:[%s572] sm:$0xf]
        %574 = vrot.lane.b32.xlu0 %v521, 116
        %v575 = vpop.permute.xlu0 %574
        %v577 = vmul.f32 %v573, %v575
        %v578 = vsel %vm523, %v577, 0.0
        %579 = vadd.xlane.f32.xlu0 %v578
        %v580 = vpop.xlane.xlu0 %579
        %s581 = scalar_lea.vmem %s3, 12
        %v582 = vld [vmem:[%s581] sm:$0xf]
        %v583 = vadd.f32 %v580, %v582
        %v584 = vxor.u32 %v583, 2147483648
        %v585 = vmul.f32 %v584, 1.442695
        %v586 = vpow.pop %v585
        %v587 = vadd.f32 %v586, 1.0
        %v588 = vrcp.pop %v587
        %v589 = vmul.f32 1.0, %v588
        %591 = vset.pattern.permute.xlu0 0
        %592 = vperm.xlu0 %591, %v534
        %v593 = vpop.permute.xlu0 %592
        %v595 = vmul.f32 %v593, %v430
        %v596 = vmul.f32 %v593, %v435
        %598 = vset.pattern.permute.xlu0 0
        %599 = vperm.xlu0 %598, %v553
        %v600 = vpop.permute.xlu0 %599
        %v602 = vmul.f32 %v600, %v431
        %v603 = vmul.f32 %v600, %v445
        %v604 = vadd.f32 %v595, %v602
        %v605 = vadd.f32 %v596, %v603
        %607 = vset.pattern.permute.xlu0 0
        %608 = vperm.xlu0 %607, %v571
        %v609 = vpop.permute.xlu0 %608
        %v611 = vmul.f32 %v609, %v432
        %v612 = vmul.f32 %v609, %v454
        %v613 = vadd.f32 %v604, %v611
        %v614 = vadd.f32 %v605, %v612
        %616 = vset.pattern.permute.xlu0 0
        %617 = vperm.xlu0 %616, %v589
        %v618 = vpop.permute.xlu0 %617
        %v620 = vmul.f32 %v618, %v433
        %v621 = vmul.f32 %v618, %v463
        %v622 = vadd.f32 %v613, %v620
        %v623 = vadd.f32 %v614, %v621
        %v626 = vcombine.low %v622, %v623
        %628 = vst [vmem:[%s424] sm:$0xff] %v626
        %s629 = sand.u32 %s225, 1
        %s630 = scalar_lea.sflag [#allocation4], %s629
        %s631 = sand.u32 %s225, 1
        %s632 = smul.addr %s631, 8
        %s633 = scalar_lea.vmem [#allocation10], %s632
        // Predicated region
        $region69: #{tpu_custom_call.1} parent=51 // pred_check
          %p634 = pneg %p235
        $region70: #{tpu_custom_call.1} parent=51 // pred_check_branch
          %636 = sbr.rel (%p634) target = $region72
        $region71: #{tpu_custom_call.1} parent=51 // pred_region
          %s638 = ssub.s32 128, 128
          %639 = vsyncadd %s630, %s638
          %s640 = smul.addr %s29, 2
          %s641 = smul.addr %s640, 64
          %s642 = scalar_lea.hbm %s8, %s641
          %s644 = sshll.u32 %s633, 4
          %s645 = int_to_ptr.vmem [resolvable:$true] %s644
          %647 = dma.vmem_to_hbm [thread:$0]  %s645, 128, %s642, %s630
        $region72: #{tpu_custom_call.1} parent=51 // pred_fallthru
          _
      $region52: #{tpu_custom_call.1} parent=5 // pred_fallthru
        _
      %p648 = scmp.le.s32.totalorder 2, %s24
      // Predicated region
      $region73: #{tpu_custom_call.1} parent=5 // pred_check
        %p649 = pneg %p648
      $region74: #{tpu_custom_call.1} parent=5 // pred_check_branch
        %651 = sbr.rel (%p649) target = $region76
      $region75: #{tpu_custom_call.1} parent=5 // pred_region
        %s652 = ssub.s32 %s24, 2
        // Predicated region
        $region77: #{tpu_custom_call.1} parent=75 // pred_check
          %p653 = pneg %p241
        $region78: #{tpu_custom_call.1} parent=75 // pred_check_branch
          %655 = sbr.rel (%p653) target = $region80
        $region79: #{tpu_custom_call.1} parent=75 // pred_region
          %s656 = sand.u32 %s226, 1
          %s657 = scalar_lea.sflag [#allocation4], %s656
          %s658 = sand.u32 %s226, 1
          %s659 = smul.addr %s658, 8
          %s660 = scalar_lea.vmem [#allocation10], %s659
          %661 = dma.done %s657, 128
        $region80: #{tpu_custom_call.1} parent=75 // pred_fallthru
          _
      $region76: #{tpu_custom_call.1} parent=5 // pred_fallthru
        _
    $region6: #{tpu_custom_call.1} parent=1 // loop_footer
      %s28 = sadd.s32 1, %s24
    $region7: #{tpu_custom_call.1} parent=1 // loop_footer_branch
      %23 = sbr.rel target = $region3
    $region8: #{tpu_custom_call.1} parent=1 // loop_exit
      _
    %662 = vsyncpa [#allocation3], 1
    %s663 = scalar_lea.sflag [#allocation3], 1
    %664 = vsyncpa %s663, 1
    %665 = vsyncpa [#allocation6], 1
    %s666 = scalar_lea.sflag [#allocation6], 1
    %667 = vsyncpa %s666, 1
    %668 = vsyncpa [#allocation9], 1
    %s669 = scalar_lea.sflag [#allocation9], 1
    %670 = vsyncpa %s669, 1
    %671 = vsyncpa [#allocation4], 1
    %s672 = scalar_lea.sflag [#allocation4], 1
    %673 = vsyncpa %s672, 1

</llo_original>
